<compile_context>
chip_gen: v7x
topology: tpu7x:2x2x1
jax: 0.10.0
libtpu: 0.0.40
codegen_flags: <defaults>
</compile_context>

<pallas_src>
import jax
import jax.numpy as jnp
from jax.experimental import pallas as pl
from jax.experimental.pallas import tpu as pltpu


def softrmax_kernel(xt_ref, ot_ref):
    # xt_ref / ot_ref: (C, TILE_B) blocks in VMEM — batch on lanes, classes on sublanes.
    x = xt_ref[...]
    if x.dtype != jnp.float32:
        x = x.astype(jnp.float32)  # v5e has no bf16 VPU/EUP; also keeps 1/x precise

    # ||x - e_i||^2 = ||x||^2 - 2*x_i + 1 ; reduce over the class (sublane) axis.
    sq_norm = jnp.sum(x * x, axis=0, keepdims=True)        # (1, TILE_B)
    dist2 = sq_norm - 2.0 * x + 1.0                         # (C, TILE_B)
    # Guard against catastrophic cancellation near a simplex vertex: the exact
    # quantity is a sum of squares (>= 0) but the algebraic form can round
    # negative. (x exactly at a vertex still yields inf/NaN, same as PyTorch.)
    dist2 = jnp.maximum(dist2, 0.0)

    # EUP approx reciprocal + one Newton-Raphson step (rel err ~1e-7): avoids a
    # VALU-heavy exact-divide sequence on the big tensor, stays far inside the
    # 1e-5 reference tolerance.
    r = pl.reciprocal(dist2, approx=True)
    nu = r * (2.0 - dist2 * r) + 1e-20                      # (C, TILE_B)

    denom = jnp.sum(nu, axis=0, keepdims=True)              # (1, TILE_B)
    inv_denom = pl.reciprocal(denom, approx=False)          # exact; tiny tensor
    ot_ref[...] = (nu * inv_denom).astype(ot_ref.dtype)


def _round_up(n: int, m: int) -> int:
    return ((n + m - 1) // m) * m


def softrmax(x: jax.Array, *, tile_b: int = 16384) -> jax.Array:
    """Pallas TPU implementation of softRmax.forward. x: (B, num_classes)."""
    B, C = x.shape
    tile_b = max(128, _round_up(tile_b, 128))  # lane-axis blocks must be 128-aligned

    if B <= 256:
        # Tiny batch: one block covering the full array (block == array dims is
        # always layout-legal).
        tb = B
    else:
        # At least two tiles so the "parallel" grid axis can be sharded across
        # v7x's two TensorCores, capped at tile_b so each step still moves a
        # healthy slab of HBM bytes.
        tb = min(tile_b, _round_up(pl.cdiv(B, 2), 128))
    grid = (pl.cdiv(B, tb),)

    itemsize = jnp.dtype(x.dtype).itemsize
    cost = pl.CostEstimate(
        flops=10 * B * C,                      # sq_norm, dist2, Newton step, normalize
        transcendentals=B * (C + 1),           # reciprocals: (B,C) approx + (B,) exact
        bytes_accessed=2 * B * C * itemsize,   # read x + write pos
    )

    # Lane-dense layout: batch on the 128-lane axis, classes on sublanes.
    xt = x.T                                   # (C, B) — layout plumbing only

    out_t = pl.pallas_call(
        softrmax_kernel,
        out_shape=jax.ShapeDtypeStruct((C, B), x.dtype),
        grid_spec=pltpu.PrefetchScalarGridSpec(
            num_scalar_prefetch=0,
            grid=grid,
            in_specs=[pl.BlockSpec((C, tb), lambda i: (0, i))],
            out_specs=pl.BlockSpec((C, tb), lambda i: (0, i)),
        ),
        compiler_params=pltpu.CompilerParams(
            # Batch tiles are independent -> shard across TCs on v7x; harmless
            # on single-TC v5e/v6e.
            dimension_semantics=("parallel",),
        ),
        cost_estimate=cost,
    )(xt)

    return out_t.T                             # back to the module's (B, C) interface


def softrmax_ref(x: jax.Array) -> jax.Array:
    """Pure-JAX reference mirroring the literal PyTorch loop."""
    C = x.shape[1]
    e = jnp.eye(C, dtype=x.dtype)
    nu = [1.0 / jnp.sum((x - e[i]) ** 2, axis=1) + 1e-20 for i in range(C)]
    total = sum(nu)
    pos = [nu_i / total for nu_i in nu]
    return jnp.stack(pos, axis=1)


if __name__ == "__main__":
    key = jax.random.PRNGKey(0)
    num_classes = 10  # CIFAR-10 style head

    # Small primary test (matches the module's typical head shape).
    B = 8
    x = jax.random.normal(key, (B, num_classes), dtype=jnp.float32)
    out = jax.block_until_ready(softrmax(x))
    ref = softrmax_ref(x)
    assert out.shape == (B, num_classes)
    assert jnp.allclose(out, ref, atol=1e-5, rtol=1e-5), "mismatch vs reference (small)"
    assert jnp.allclose(jnp.sum(out, axis=1), jnp.ones((B,)), atol=1e-5)

    # Multi-tile test: exercises the batch-tiled grid (>=2 tiles, ragged final
    # block) with a small lane-aligned tile size.
    B2 = 520
    x2 = jax.random.normal(jax.random.PRNGKey(1), (B2, num_classes), dtype=jnp.float32)
    out2 = jax.block_until_ready(softrmax(x2, tile_b=256))
    ref2 = softrmax_ref(x2)
    assert out2.shape == (B2, num_classes)
    assert jnp.allclose(out2, ref2, atol=1e-5, rtol=1e-5), "mismatch vs reference (tiled)"
    assert jnp.allclose(jnp.sum(out2, axis=1), jnp.ones((B2,)), atol=1e-5)

    print("KERNEL_OK")
</pallas_src>

<mosaic_0001>
module attributes {stable_mosaic.version = 11 : i64} {
  func.func @softrmax_kernel(%arg0: i32, %arg1: memref<10x8xf32, #tpu.memory_space<vmem>>, %arg2: memref<10x8xf32, #tpu.memory_space<vmem>>) attributes {dimension_semantics = [#tpu.dimension_semantics<parallel>], iteration_bounds = array<i64: 1>, scalar_prefetch = 0 : i64, scratch_operands = 0 : i64, tpu.core_type = #tpu.core_type<tc>, window_params = [{transform_indices = @transform_0, window_bounds = array<i64: 10, 8>}, {transform_indices = @transform_1, window_bounds = array<i64: 10, 8>}]} {
    %c0 = arith.constant 0 : index
    %c0_0 = arith.constant 0 : index
    %0 = vector.load %arg1[%c0, %c0_0] : memref<10x8xf32, #tpu.memory_space<vmem>>, vector<10x8xf32>
    %1 = arith.mulf %0, %0 : vector<10x8xf32>
    %cst = arith.constant dense<0.000000e+00> : vector<8xf32>
    %2 = vector.multi_reduction <add>, %1, %cst [0] : vector<10x8xf32> to vector<8xf32>
    %3 = vector.shape_cast %2 : vector<8xf32> to vector<1x8xf32>
    %cst_1 = arith.constant 2.000000e+00 : f32
    %4 = vector.broadcast %cst_1 : f32 to vector<10x8xf32>
    %5 = arith.mulf %4, %0 : vector<10x8xf32>
    %6 = vector.broadcast %3 : vector<1x8xf32> to vector<10x8xf32>
    %7 = arith.subf %6, %5 : vector<10x8xf32>
    %cst_2 = arith.constant 1.000000e+00 : f32
    %8 = vector.broadcast %cst_2 : f32 to vector<10x8xf32>
    %9 = arith.addf %7, %8 : vector<10x8xf32>
    %cst_3 = arith.constant 0.000000e+00 : f32
    %10 = vector.broadcast %cst_3 : f32 to vector<10x8xf32>
    %11 = arith.maximumf %9, %10 : vector<10x8xf32>
    %12 = tpu.reciprocal %11 {approx = true} : vector<10x8xf32> -> vector<10x8xf32>
    %13 = arith.mulf %11, %12 : vector<10x8xf32>
    %cst_4 = arith.constant 2.000000e+00 : f32
    %14 = vector.broadcast %cst_4 : f32 to vector<10x8xf32>
    %15 = arith.subf %14, %13 : vector<10x8xf32>
    %16 = arith.mulf %12, %15 : vector<10x8xf32>
    %cst_5 = arith.constant 9.99999968E-21 : f32
    %17 = vector.broadcast %cst_5 : f32 to vector<10x8xf32>
    %18 = arith.addf %16, %17 : vector<10x8xf32>
    %cst_6 = arith.constant dense<0.000000e+00> : vector<8xf32>
    %19 = vector.multi_reduction <add>, %18, %cst_6 [0] : vector<10x8xf32> to vector<8xf32>
    %20 = vector.shape_cast %19 : vector<8xf32> to vector<1x8xf32>
    %21 = tpu.reciprocal %20 : vector<1x8xf32> -> vector<1x8xf32>
    %22 = vector.broadcast %21 : vector<1x8xf32> to vector<10x8xf32>
    %23 = arith.mulf %18, %22 : vector<10x8xf32>
    %c0_7 = arith.constant 0 : index
    %c0_8 = arith.constant 0 : index
    %24 = vector.load %arg2[%c0_7, %c0_8] : memref<10x8xf32, #tpu.memory_space<vmem>>, vector<10x8xf32>
    tpu.vector_store %arg2[%c0_7, %c0_8], %23 {strides = array<i32>} : memref<10x8xf32, #tpu.memory_space<vmem>>, vector<10x8xf32>,
    return
  }
  func.func @transform_0(%arg0: i32) -> (i32, i32) {
    %c0_i32 = arith.constant 0 : i32
    %c0_i32_0 = arith.constant 0 : i32
    return %c0_i32, %arg0 : i32, i32
  }
  func.func @transform_1(%arg0: i32) -> (i32, i32) {
    %c0_i32 = arith.constant 0 : i32
    %c0_i32_0 = arith.constant 0 : i32
    return %c0_i32, %arg0 : i32, i32
  }
}

</mosaic_0001>

<llo_original>
// kernel: tpu_custom_call.1
$region0: #{tpu_custom_call.1}
  #allocation0 [shape = 'u32[]', space=smem, size = 0x4, offset = 0x4, fixed_abs, tag = 'smem constant byte address 0x4 - core index']
  #allocation1 [shape = 'u32[144,128]{1,0:T(1,128)}', space=vmem, size = 0x12000, scoped, tag = 'internal scratch']
  %s0 = inlined_call_operand.vmem [shape: f32[10,8], index: 0, kind: input, shape index: {}]
  %s1 = inlined_call_operand.vmem [shape: f32[10,8], index: 1, kind: output, shape index: {}]
  %s2 = sld [smem:[#allocation0]]
  $region14: #{tpu_custom_call.1} parent=0
    _
  %s4 = ssub.s32 1, %s2
  %s5 = scalar_select 0, %s4, %s2
  // Predicated region
  $region2: #{tpu_custom_call.1} parent=0 // pred_check
    _
  $region3: #{tpu_custom_call.1} parent=0 // pred_check_branch
    %7 = sbr.rel (0) target = $region5
  $region4: #{tpu_custom_call.1} parent=0 // pred_region
    _
  $region5: #{tpu_custom_call.1} parent=0 // pred_fallthru
    _
  %v8 = vld [vmem:[%s0] sm:$0xff]
  %v9 = vld [vmem:[%s0 + $0x8] sm:$0x3]
  %v10 = vmul.f32 %v8, %v8
  %v11 = vmul.f32 %v9, %v9
  %vm12 = vcmask 64512
  %v13 = vsel %vm12, %v10, 0.0
  %vm14 = vcmask 58368
  %v15 = vsel %vm14, %v11, 0.0
  %v16 = vadd.f32 %v13, %v15
  %v17 = vrot.slane %v16, 4
  %v18 = vadd.f32 %v16, %v17
  %v19 = vrot.slane %v18, 2
  %v20 = vadd.f32 %v18, %v19
  %v21 = vrot.slane %v20, 1
  %v22 = vadd.f32 %v20, %v21
  %v23 = vmul.f32 %v8, 2.0
  %v24 = vmul.f32 %v9, 2.0
  %v25 = vsub.f32 %v22, %v23
  %v26 = vsub.f32 %v22, %v24
  %v27 = vadd.f32 %v25, 1.0
  %v28 = vadd.f32 %v26, 1.0
  %v29 = vmax.f32 %v27, 0.0
  %v30 = vmax.f32 %v28, 0.0
  %v31 = vrcp.pop %v29
  %v32 = vrcp.pop %v30
  %v33 = vmul.f32 %v29, %v31
  %v34 = vmul.f32 %v30, %v32
  %v35 = vsub.f32 2.0, %v33
  %v36 = vsub.f32 2.0, %v34
  %v37 = vmul.f32 %v31, %v35
  %v38 = vmul.f32 %v32, %v36
  %v39 = vadd.f32 %v37, 1e-20
  %v40 = vadd.f32 %v38, 1e-20
  %v41 = vsel %vm12, %v39, 0.0
  %v42 = vsel %vm14, %v40, 0.0
  %v43 = vadd.f32 %v41, %v42
  %v44 = vrot.slane %v43, 4
  %v45 = vadd.f32 %v43, %v44
  %v46 = vrot.slane %v45, 2
  %v47 = vadd.f32 %v45, %v46
  %v48 = vrot.slane %v47, 1
  %v49 = vadd.f32 %v47, %v48
  %v50 = vrcp.pop %v49
  %v51 = vmul.f32 %v39, %v50
  %v52 = vmul.f32 %v40, %v50
  %53 = vst.msk [vmem:[%s1] sm:$0xff] %vm12, %v51
  %54 = vst.msk [vmem:[%s1 + $0x8] sm:$0x3] %vm14, %v52
  // Predicated region
  $region6: #{tpu_custom_call.1} parent=0 // pred_check
    _
  $region7: #{tpu_custom_call.1} parent=0 // pred_check_branch
    %56 = sbr.rel (0) target = $region9
  $region8: #{tpu_custom_call.1} parent=0 // pred_region
    _
  $region9: #{tpu_custom_call.1} parent=0 // pred_fallthru
    _
  // Predicated region
  $region10: #{tpu_custom_call.1} parent=0 // pred_check
    _
  $region11: #{tpu_custom_call.1} parent=0 // pred_check_branch
    %58 = sbr.rel (0) target = $region13
  $region12: #{tpu_custom_call.1} parent=0 // pred_region
    _
  $region13: #{tpu_custom_call.1} parent=0 // pred_fallthru
    _

</llo_original>
